<compile_context>
chip_gen: v5e
topology: v5e:2x2
jax: 0.10.0
libtpu: 0.0.40
codegen_flags: <defaults>
</compile_context>

<pallas_src>
import jax
import jax.numpy as jnp
from jax.experimental import pallas as pl
from jax.experimental.pallas import tpu as pltpu


# ----------------------------------------------------------------------------
# Kernel
# ----------------------------------------------------------------------------
def _generator_kernel(x_ref, band_ref, bias_ref, o_ref, apad_ref, acc_ref):
    # x_ref   : (Nb, H, W*C)            bf16  lane-dense input block
    # band_ref: (L, 3, W*C, W*C)        bf16  block-banded conv weights (per kernel row)
    # bias_ref: (L, 1, W*C)             f32   lane-wide biases
    # o_ref   : (Nb, H, W*C)            bf16  lane-dense output block
    # apad_ref: (Nb*HPP, W*C)           f32   padded activations / residual path
    # acc_ref : (Nb*H,  W*C)            f32   conv-output accumulator
    nb, H, WC = x_ref.shape
    L = band_ref.shape[0]
    hpp = apad_ref.shape[0] // nb        # per-image padded row stride (>= H+2, mult of 8)

    # Stage the input block into the f32 padded-activation scratch.  Halo /
    # alignment rows are zeroed once and never rewritten -> "same" H padding
    # for every layer.
    apad_ref[...] = jnp.zeros(apad_ref.shape, apad_ref.dtype)
    for i in range(nb):
        apad_ref[i * hpp + 1:i * hpp + 1 + H, :] = x_ref[i].astype(jnp.float32)

    for l in range(L):                                   # layers fused (L static)
        # One bf16 cast of the whole padded slab per layer (operands for the MXU).
        a_bf = apad_ref[...].astype(jnp.bfloat16)        # (Nb*HPP, WC)
        # Accumulator initialized with the broadcast bias (saves a zero+add pass).
        acc_ref[...] = jnp.broadcast_to(bias_ref[l], acc_ref.shape)
        for kh in range(3):                              # 3 big-M MXU matmuls / layer
            r = jnp.dot(a_bf, band_ref[l, kh],
                        preferred_element_type=jnp.float32)   # (Nb*HPP, WC) f32
            for i in range(nb):
                acc_ref[i * H:(i + 1) * H, :] += \
                    r[i * hpp + kh:i * hpp + kh + H, :]
        # Residual add in f32, kept in the padded scratch for the next layer.
        for i in range(nb):
            apad_ref[i * hpp + 1:i * hpp + 1 + H, :] += acc_ref[i * H:(i + 1) * H, :]

    for i in range(nb):
        o_ref[i] = apad_ref[i * hpp + 1:i * hpp + 1 + H, :].astype(o_ref.dtype)


def _pick_batch_block(N, H, WC, itemsize=2, target_bytes=512 * 1024):
    """Largest batch block with <= ~512 KB of activation I/O per grid step,
    keeping the grid >= 2 steps when possible (v7x has 2 TensorCores)."""
    best = 1
    for nb in range(1, N + 1):
        if N % nb:
            continue
        if nb * H * WC * itemsize > target_bytes:
            break
        if (N // nb >= 2) or (N < 2):
            best = nb
    return best


def _generator_pallas(x_slab, band, bias_wide, nb):
    N, H, WC = x_slab.shape
    L = band.shape[0]
    hpp = -(-(H + 2) // 8) * 8           # padded per-image rows, multiple of 8
    return pl.pallas_call(
        _generator_kernel,
        out_shape=jax.ShapeDtypeStruct((N, H, WC), x_slab.dtype),
        grid=(N // nb,),
        in_specs=[
            pl.BlockSpec((nb, H, WC), lambda n: (n, 0, 0)),
            # Constant block index -> weights/biases stay resident in VMEM.
            pl.BlockSpec((L, 3, WC, WC), lambda n: (0, 0, 0, 0)),
            pl.BlockSpec((L, 1, WC), lambda n: (0, 0, 0)),
        ],
        out_specs=pl.BlockSpec((nb, H, WC), lambda n: (n, 0, 0)),
        scratch_shapes=[
            pltpu.VMEM((nb * hpp, WC), jnp.float32),   # padded activations / residual
            pltpu.VMEM((nb * H, WC), jnp.float32),     # conv-output accumulator
        ],
        compiler_params=pltpu.CompilerParams(
            dimension_semantics=("parallel",),
            vmem_limit_bytes=32 * 1024 * 1024,
        ),
    )(x_slab, band, bias_wide)


# ----------------------------------------------------------------------------
# Hoisted, precomputed constants (build ONCE per weight update, not per call)
# ----------------------------------------------------------------------------
def build_generator_constants(params, W):
    """Block-banded conv weights and lane-wide biases.

    Band[l, kh][wi*C+ci, w*C+co] = w_l[kh, kw, ci, co] with kw = wi - w + 1;
    out-of-range width taps are absent (zero rows) -> "same" zero padding in W.
    """
    if not params:
        return (jnp.zeros((0, 3, 1, 1), jnp.bfloat16),
                jnp.zeros((0, 1, 1), jnp.float32))
    bands, biases = [], []
    for (w, b) in params:
        C = w.shape[2]
        WC = W * C
        per_kh = []
        for kh in range(3):
            m = jnp.zeros((WC, WC), jnp.float32)
            for kw in range(3):
                m = m + jnp.kron(jnp.eye(W, k=1 - kw, dtype=jnp.float32), w[kh, kw])
            per_kh.append(m)
        bands.append(jnp.stack(per_kh))
        biases.append(jnp.tile(b, W)[None, :])            # (1, W*C)
    band = jnp.stack(bands).astype(jnp.bfloat16)          # (L, 3, W*C, W*C)
    bias_wide = jnp.stack(biases).astype(jnp.float32)     # (L, 1, W*C)
    return band, bias_wide


# ----------------------------------------------------------------------------
# Hot path (slab layout) + demo-only layout helpers
# ----------------------------------------------------------------------------
@jax.jit
def generator_forward_slab(x_slab, band, bias_wide):
    """x_slab: (N, H, W*C) bf16 lane-dense slab.  Returns bf16 slab.

    In a real model, keep this slab layout (and bf16) end-to-end so no
    per-call relayout HBM passes are needed.
    """
    if band.shape[0] == 0:
        return x_slab
    N, H, WC = x_slab.shape
    nb = _pick_batch_block(N, H, WC)
    return _generator_pallas(x_slab, band, bias_wide, nb)


def nchw_to_slab(x_nchw):
    N, C, H, W = x_nchw.shape
    return jnp.transpose(x_nchw, (0, 2, 3, 1)).reshape(N, H, W * C)


def slab_to_nchw(slab, C):
    N, H, WC = slab.shape
    W = WC // C
    return jnp.transpose(slab.reshape(N, H, W, C), (0, 3, 1, 2))


# ----------------------------------------------------------------------------
# Parameter init + references
# ----------------------------------------------------------------------------
def init_generator_params(key, num_channels):
    """One (weight, bias) per ResidualBlock, Conv2d(C, C, 3, 1, 1), HWIO weights."""
    params = []
    for i in range(len(num_channels) - 1):
        c = num_channels[i]
        key, kw, kb = jax.random.split(key, 3)
        fan_in = c * 3 * 3
        bound = 1.0 / jnp.sqrt(fan_in)
        w = jax.random.uniform(kw, (3, 3, c, c), jnp.float32, -bound, bound)
        b = jax.random.uniform(kb, (c,), jnp.float32, -bound, bound)
        params.append((w, b))
    return params


def _reference_forward_f32(x_nchw, params):
    """Pure-JAX full-f32 reference."""
    x = x_nchw
    for (w, b) in params:
        y = jax.lax.conv_general_dilated(
            x, w, window_strides=(1, 1), padding="SAME",
            dimension_numbers=("NCHW", "HWIO", "NCHW"))
        x = x + y + b.reshape(1, -1, 1, 1)
    return x


def _reference_forward_bf16(x_nchw, params):
    """Mirrors the kernel's numerics: bf16 activation I/O, bf16 matmul operands,
    f32 accumulation / bias / residual."""
    x = x_nchw.astype(jnp.bfloat16).astype(jnp.float32)
    for (w, b) in params:
        y = jax.lax.conv_general_dilated(
            x.astype(jnp.bfloat16), w.astype(jnp.bfloat16),
            window_strides=(1, 1), padding="SAME",
            dimension_numbers=("NCHW", "HWIO", "NCHW"),
            preferred_element_type=jnp.float32)
        x = x + y + b.reshape(1, -1, 1, 1)
    return x.astype(jnp.bfloat16).astype(jnp.float32)


if __name__ == "__main__":
    key = jax.random.PRNGKey(0)
    k_x, k_p = jax.random.split(key)

    # Generator(numChannels=[8, 8, 8]) -> two ResidualBlock(8, 8) layers.
    num_channels = [8, 8, 8]
    N, C, H, W = 2, num_channels[0], 16, 16      # W * C = 128 lanes (lane-dense)

    x = jax.random.normal(k_x, (N, C, H, W), jnp.float32)
    params = init_generator_params(k_p, num_channels)

    # Hoisted: banded weights built once per weight update, not per forward.
    band, bias_wide = build_generator_constants(params, W)
    band = jax.device_put(band)
    bias_wide = jax.device_put(bias_wide)

    # Demo-only layout conversion (done once); real pipelines keep the bf16 slab.
    x_slab = nchw_to_slab(x).astype(jnp.bfloat16)

    out_slab = jax.block_until_ready(generator_forward_slab(x_slab, band, bias_wide))
    out = slab_to_nchw(out_slab.astype(jnp.float32), C)
    assert out.shape == (N, C, H, W)

    ref_tight = _reference_forward_bf16(x, params)   # same numerics as kernel
    ref_loose = _reference_forward_f32(x, params)    # full-precision sanity check
    err_tight = float(jnp.max(jnp.abs(out - ref_tight)))
    err_loose = float(jnp.max(jnp.abs(out - ref_loose)))
    assert err_tight < 8e-2, f"kernel vs bf16-emulated reference: {err_tight}"
    assert err_loose < 2e-1, f"kernel vs f32 reference: {err_loose}"

    print("KERNEL_OK")
</pallas_src>

<mosaic_0001>
module attributes {stable_mosaic.version = 11 : i64} {
  func.func @_generator_kernel(%arg0: i32, %arg1: memref<1x16x128xbf16, #tpu.memory_space<vmem>>, %arg2: memref<2x3x128x128xbf16, #tpu.memory_space<vmem>>, %arg3: memref<2x1x128xf32, #tpu.memory_space<vmem>>, %arg4: memref<1x16x128xbf16, #tpu.memory_space<vmem>>, %arg5: memref<24x128xf32, #tpu.memory_space<vmem>>, %arg6: memref<16x128xf32, #tpu.memory_space<vmem>>) attributes {dimension_semantics = [#tpu.dimension_semantics<parallel>], iteration_bounds = array<i64: 2>, scalar_prefetch = 0 : i64, scratch_operands = 2 : i64, tpu.core_type = #tpu.core_type<tc>, window_params = [{transform_indices = @transform_0, window_bounds = array<i64: 1, 16, 128>}, {pipeline_mode = #tpu.pipeline_mode<synchronous>, transform_indices = @transform_1, window_bounds = array<i64: 2, 3, 128, 128>}, {pipeline_mode = #tpu.pipeline_mode<synchronous>, transform_indices = @transform_2, window_bounds = array<i64: 2, 1, 128>}, {transform_indices = @transform_3, window_bounds = array<i64: 1, 16, 128>}]} {
    %cst = arith.constant 0.000000e+00 : f32
    %0 = vector.broadcast %cst : f32 to vector<24x128xf32>
    %c0 = arith.constant 0 : index
    %c0_0 = arith.constant 0 : index
    %1 = vector.load %arg5[%c0, %c0_0] : memref<24x128xf32, #tpu.memory_space<vmem>>, vector<24x128xf32>
    tpu.vector_store %arg5[%c0, %c0_0], %0 {strides = array<i32>} : memref<24x128xf32, #tpu.memory_space<vmem>>, vector<24x128xf32>,
    %c0_1 = arith.constant 0 : index
    %c0_2 = arith.constant 0 : index
    %c0_3 = arith.constant 0 : index
    %2 = vector.load %arg1[%c0_1, %c0_2, %c0_3] : memref<1x16x128xbf16, #tpu.memory_space<vmem>>, vector<1x16x128xbf16>
    %3 = vector.shape_cast %2 : vector<1x16x128xbf16> to vector<16x128xbf16>
    %4 = arith.extf %3 : vector<16x128xbf16> to vector<16x128xf32>
    %c1 = arith.constant 1 : index
    %c0_4 = arith.constant 0 : index
    %5 = vector.load %arg5[%c1, %c0_4] : memref<24x128xf32, #tpu.memory_space<vmem>>, vector<16x128xf32>
    tpu.vector_store %arg5[%c1, %c0_4], %4 {strides = array<i32>} : memref<24x128xf32, #tpu.memory_space<vmem>>, vector<16x128xf32>,
    %c0_5 = arith.constant 0 : index
    %c0_6 = arith.constant 0 : index
    %6 = vector.load %arg5[%c0_5, %c0_6] : memref<24x128xf32, #tpu.memory_space<vmem>>, vector<24x128xf32>
    %7 = arith.truncf %6 : vector<24x128xf32> to vector<24x128xbf16>
    %c0_7 = arith.constant 0 : index
    %c0_8 = arith.constant 0 : index
    %c0_9 = arith.constant 0 : index
    %8 = vector.load %arg3[%c0_7, %c0_8, %c0_9] : memref<2x1x128xf32, #tpu.memory_space<vmem>>, vector<1x1x128xf32>
    %9 = vector.shape_cast %8 : vector<1x1x128xf32> to vector<1x128xf32>
    %10 = vector.shape_cast %9 : vector<1x128xf32> to vector<1x128xf32>
    %11 = vector.broadcast %10 : vector<1x128xf32> to vector<16x128xf32>
    %c0_10 = arith.constant 0 : index
    %c0_11 = arith.constant 0 : index
    %12 = vector.load %arg6[%c0_10, %c0_11] : memref<16x128xf32, #tpu.memory_space<vmem>>, vector<16x128xf32>
    tpu.vector_store %arg6[%c0_10, %c0_11], %11 {strides = array<i32>} : memref<16x128xf32, #tpu.memory_space<vmem>>, vector<16x128xf32>,
    %c0_12 = arith.constant 0 : index
    %c0_13 = arith.constant 0 : index
    %c0_14 = arith.constant 0 : index
    %c0_15 = arith.constant 0 : index
    %13 = vector.load %arg2[%c0_12, %c0_13, %c0_14, %c0_15] : memref<2x3x128x128xbf16, #tpu.memory_space<vmem>>, vector<1x1x128x128xbf16>
    %14 = vector.shape_cast %13 : vector<1x1x128x128xbf16> to vector<128x128xbf16>
    %cst_16 = arith.constant dense<0.000000e+00> : vector<24x128xf32>
    %15 = tpu.matmul %7, %14, %cst_16 {dimension_numbers = #tpu.dot_dimension_numbers<[1], [0], [0], [1], [0, 0, 1, 1], [], []>} : vector<24x128xbf16>, vector<128x128xbf16>, vector<24x128xf32> -> vector<24x128xf32>
    %c0_17 = arith.constant 0 : index
    %c0_18 = arith.constant 0 : index
    %16 = vector.load %arg6[%c0_17, %c0_18] : memref<16x128xf32, #tpu.memory_space<vmem>>, vector<16x128xf32>
    %17 = vector.extract_strided_slice %15 {offsets = [0, 0], sizes = [16, 128], strides = [1, 1]} : vector<24x128xf32> to vector<16x128xf32>
    %18 = arith.addf %16, %17 : vector<16x128xf32>
    %c0_19 = arith.constant 0 : index
    %c0_20 = arith.constant 0 : index
    %19 = vector.load %arg6[%c0_19, %c0_20] : memref<16x128xf32, #tpu.memory_space<vmem>>, vector<16x128xf32>
    tpu.vector_store %arg6[%c0_19, %c0_20], %18 {strides = array<i32>} : memref<16x128xf32, #tpu.memory_space<vmem>>, vector<16x128xf32>,
    %c0_21 = arith.constant 0 : index
    %c1_22 = arith.constant 1 : index
    %c0_23 = arith.constant 0 : index
    %c0_24 = arith.constant 0 : index
    %20 = vector.load %arg2[%c0_21, %c1_22, %c0_23, %c0_24] : memref<2x3x128x128xbf16, #tpu.memory_space<vmem>>, vector<1x1x128x128xbf16>
    %21 = vector.shape_cast %20 : vector<1x1x128x128xbf16> to vector<128x128xbf16>
    %cst_25 = arith.constant dense<0.000000e+00> : vector<24x128xf32>
    %22 = tpu.matmul %7, %21, %cst_25 {dimension_numbers = #tpu.dot_dimension_numbers<[1], [0], [0], [1], [0, 0, 1, 1], [], []>} : vector<24x128xbf16>, vector<128x128xbf16>, vector<24x128xf32> -> vector<24x128xf32>
    %c0_26 = arith.constant 0 : index
    %c0_27 = arith.constant 0 : index
    %23 = vector.load %arg6[%c0_26, %c0_27] : memref<16x128xf32, #tpu.memory_space<vmem>>, vector<16x128xf32>
    %24 = vector.extract_strided_slice %22 {offsets = [1, 0], sizes = [16, 128], strides = [1, 1]} : vector<24x128xf32> to vector<16x128xf32>
    %25 = arith.addf %23, %24 : vector<16x128xf32>
    %c0_28 = arith.constant 0 : index
    %c0_29 = arith.constant 0 : index
    %26 = vector.load %arg6[%c0_28, %c0_29] : memref<16x128xf32, #tpu.memory_space<vmem>>, vector<16x128xf32>
    tpu.vector_store %arg6[%c0_28, %c0_29], %25 {strides = array<i32>} : memref<16x128xf32, #tpu.memory_space<vmem>>, vector<16x128xf32>,
    %c0_30 = arith.constant 0 : index
    %c2 = arith.constant 2 : index
    %c0_31 = arith.constant 0 : index
    %c0_32 = arith.constant 0 : index
    %27 = vector.load %arg2[%c0_30, %c2, %c0_31, %c0_32] : memref<2x3x128x128xbf16, #tpu.memory_space<vmem>>, vector<1x1x128x128xbf16>
    %28 = vector.shape_cast %27 : vector<1x1x128x128xbf16> to vector<128x128xbf16>
    %cst_33 = arith.constant dense<0.000000e+00> : vector<24x128xf32>
    %29 = tpu.matmul %7, %28, %cst_33 {dimension_numbers = #tpu.dot_dimension_numbers<[1], [0], [0], [1], [0, 0, 1, 1], [], []>} : vector<24x128xbf16>, vector<128x128xbf16>, vector<24x128xf32> -> vector<24x128xf32>
    %c0_34 = arith.constant 0 : index
    %c0_35 = arith.constant 0 : index
    %30 = vector.load %arg6[%c0_34, %c0_35] : memref<16x128xf32, #tpu.memory_space<vmem>>, vector<16x128xf32>
    %31 = vector.extract_strided_slice %29 {offsets = [2, 0], sizes = [16, 128], strides = [1, 1]} : vector<24x128xf32> to vector<16x128xf32>
    %32 = arith.addf %30, %31 : vector<16x128xf32>
    %c0_36 = arith.constant 0 : index
    %c0_37 = arith.constant 0 : index
    %33 = vector.load %arg6[%c0_36, %c0_37] : memref<16x128xf32, #tpu.memory_space<vmem>>, vector<16x128xf32>
    tpu.vector_store %arg6[%c0_36, %c0_37], %32 {strides = array<i32>} : memref<16x128xf32, #tpu.memory_space<vmem>>, vector<16x128xf32>,
    %c1_38 = arith.constant 1 : index
    %c0_39 = arith.constant 0 : index
    %34 = vector.load %arg5[%c1_38, %c0_39] : memref<24x128xf32, #tpu.memory_space<vmem>>, vector<16x128xf32>
    %c0_40 = arith.constant 0 : index
    %c0_41 = arith.constant 0 : index
    %35 = vector.load %arg6[%c0_40, %c0_41] : memref<16x128xf32, #tpu.memory_space<vmem>>, vector<16x128xf32>
    %36 = arith.addf %34, %35 : vector<16x128xf32>
    %c1_42 = arith.constant 1 : index
    %c0_43 = arith.constant 0 : index
    %37 = vector.load %arg5[%c1_42, %c0_43] : memref<24x128xf32, #tpu.memory_space<vmem>>, vector<16x128xf32>
    tpu.vector_store %arg5[%c1_42, %c0_43], %36 {strides = array<i32>} : memref<24x128xf32, #tpu.memory_space<vmem>>, vector<16x128xf32>,
    %c0_44 = arith.constant 0 : index
    %c0_45 = arith.constant 0 : index
    %38 = vector.load %arg5[%c0_44, %c0_45] : memref<24x128xf32, #tpu.memory_space<vmem>>, vector<24x128xf32>
    %39 = arith.truncf %38 : vector<24x128xf32> to vector<24x128xbf16>
    %c1_46 = arith.constant 1 : index
    %c0_47 = arith.constant 0 : index
    %c0_48 = arith.constant 0 : index
    %40 = vector.load %arg3[%c1_46, %c0_47, %c0_48] : memref<2x1x128xf32, #tpu.memory_space<vmem>>, vector<1x1x128xf32>
    %41 = vector.shape_cast %40 : vector<1x1x128xf32> to vector<1x128xf32>
    %42 = vector.shape_cast %41 : vector<1x128xf32> to vector<1x128xf32>
    %43 = vector.broadcast %42 : vector<1x128xf32> to vector<16x128xf32>
    %c0_49 = arith.constant 0 : index
    %c0_50 = arith.constant 0 : index
    %44 = vector.load %arg6[%c0_49, %c0_50] : memref<16x128xf32, #tpu.memory_space<vmem>>, vector<16x128xf32>
    tpu.vector_store %arg6[%c0_49, %c0_50], %43 {strides = array<i32>} : memref<16x128xf32, #tpu.memory_space<vmem>>, vector<16x128xf32>,
    %c1_51 = arith.constant 1 : index
    %c0_52 = arith.constant 0 : index
    %c0_53 = arith.constant 0 : index
    %c0_54 = arith.constant 0 : index
    %45 = vector.load %arg2[%c1_51, %c0_52, %c0_53, %c0_54] : memref<2x3x128x128xbf16, #tpu.memory_space<vmem>>, vector<1x1x128x128xbf16>
    %46 = vector.shape_cast %45 : vector<1x1x128x128xbf16> to vector<128x128xbf16>
    %cst_55 = arith.constant dense<0.000000e+00> : vector<24x128xf32>
    %47 = tpu.matmul %39, %46, %cst_55 {dimension_numbers = #tpu.dot_dimension_numbers<[1], [0], [0], [1], [0, 0, 1, 1], [], []>} : vector<24x128xbf16>, vector<128x128xbf16>, vector<24x128xf32> -> vector<24x128xf32>
    %c0_56 = arith.constant 0 : index
    %c0_57 = arith.constant 0 : index
    %48 = vector.load %arg6[%c0_56, %c0_57] : memref<16x128xf32, #tpu.memory_space<vmem>>, vector<16x128xf32>
    %49 = vector.extract_strided_slice %47 {offsets = [0, 0], sizes = [16, 128], strides = [1, 1]} : vector<24x128xf32> to vector<16x128xf32>
    %50 = arith.addf %48, %49 : vector<16x128xf32>
    %c0_58 = arith.constant 0 : index
    %c0_59 = arith.constant 0 : index
    %51 = vector.load %arg6[%c0_58, %c0_59] : memref<16x128xf32, #tpu.memory_space<vmem>>, vector<16x128xf32>
    tpu.vector_store %arg6[%c0_58, %c0_59], %50 {strides = array<i32>} : memref<16x128xf32, #tpu.memory_space<vmem>>, vector<16x128xf32>,
    %c1_60 = arith.constant 1 : index
    %c1_61 = arith.constant 1 : index
    %c0_62 = arith.constant 0 : index
    %c0_63 = arith.constant 0 : index
    %52 = vector.load %arg2[%c1_60, %c1_61, %c0_62, %c0_63] : memref<2x3x128x128xbf16, #tpu.memory_space<vmem>>, vector<1x1x128x128xbf16>
    %53 = vector.shape_cast %52 : vector<1x1x128x128xbf16> to vector<128x128xbf16>
    %cst_64 = arith.constant dense<0.000000e+00> : vector<24x128xf32>
    %54 = tpu.matmul %39, %53, %cst_64 {dimension_numbers = #tpu.dot_dimension_numbers<[1], [0], [0], [1], [0, 0, 1, 1], [], []>} : vector<24x128xbf16>, vector<128x128xbf16>, vector<24x128xf32> -> vector<24x128xf32>
    %c0_65 = arith.constant 0 : index
    %c0_66 = arith.constant 0 : index
    %55 = vector.load %arg6[%c0_65, %c0_66] : memref<16x128xf32, #tpu.memory_space<vmem>>, vector<16x128xf32>
    %56 = vector.extract_strided_slice %54 {offsets = [1, 0], sizes = [16, 128], strides = [1, 1]} : vector<24x128xf32> to vector<16x128xf32>
    %57 = arith.addf %55, %56 : vector<16x128xf32>
    %c0_67 = arith.constant 0 : index
    %c0_68 = arith.constant 0 : index
    %58 = vector.load %arg6[%c0_67, %c0_68] : memref<16x128xf32, #tpu.memory_space<vmem>>, vector<16x128xf32>
    tpu.vector_store %arg6[%c0_67, %c0_68], %57 {strides = array<i32>} : memref<16x128xf32, #tpu.memory_space<vmem>>, vector<16x128xf32>,
    %c1_69 = arith.constant 1 : index
    %c2_70 = arith.constant 2 : index
    %c0_71 = arith.constant 0 : index
    %c0_72 = arith.constant 0 : index
    %59 = vector.load %arg2[%c1_69, %c2_70, %c0_71, %c0_72] : memref<2x3x128x128xbf16, #tpu.memory_space<vmem>>, vector<1x1x128x128xbf16>
    %60 = vector.shape_cast %59 : vector<1x1x128x128xbf16> to vector<128x128xbf16>
    %cst_73 = arith.constant dense<0.000000e+00> : vector<24x128xf32>
    %61 = tpu.matmul %39, %60, %cst_73 {dimension_numbers = #tpu.dot_dimension_numbers<[1], [0], [0], [1], [0, 0, 1, 1], [], []>} : vector<24x128xbf16>, vector<128x128xbf16>, vector<24x128xf32> -> vector<24x128xf32>
    %c0_74 = arith.constant 0 : index
    %c0_75 = arith.constant 0 : index
    %62 = vector.load %arg6[%c0_74, %c0_75] : memref<16x128xf32, #tpu.memory_space<vmem>>, vector<16x128xf32>
    %63 = vector.extract_strided_slice %61 {offsets = [2, 0], sizes = [16, 128], strides = [1, 1]} : vector<24x128xf32> to vector<16x128xf32>
    %64 = arith.addf %62, %63 : vector<16x128xf32>
    %c0_76 = arith.constant 0 : index
    %c0_77 = arith.constant 0 : index
    %65 = vector.load %arg6[%c0_76, %c0_77] : memref<16x128xf32, #tpu.memory_space<vmem>>, vector<16x128xf32>
    tpu.vector_store %arg6[%c0_76, %c0_77], %64 {strides = array<i32>} : memref<16x128xf32, #tpu.memory_space<vmem>>, vector<16x128xf32>,
    %c1_78 = arith.constant 1 : index
    %c0_79 = arith.constant 0 : index
    %66 = vector.load %arg5[%c1_78, %c0_79] : memref<24x128xf32, #tpu.memory_space<vmem>>, vector<16x128xf32>
    %c0_80 = arith.constant 0 : index
    %c0_81 = arith.constant 0 : index
    %67 = vector.load %arg6[%c0_80, %c0_81] : memref<16x128xf32, #tpu.memory_space<vmem>>, vector<16x128xf32>
    %68 = arith.addf %66, %67 : vector<16x128xf32>
    %c1_82 = arith.constant 1 : index
    %c0_83 = arith.constant 0 : index
    %69 = vector.load %arg5[%c1_82, %c0_83] : memref<24x128xf32, #tpu.memory_space<vmem>>, vector<16x128xf32>
    tpu.vector_store %arg5[%c1_82, %c0_83], %68 {strides = array<i32>} : memref<24x128xf32, #tpu.memory_space<vmem>>, vector<16x128xf32>,
    %c1_84 = arith.constant 1 : index
    %c0_85 = arith.constant 0 : index
    %70 = vector.load %arg5[%c1_84, %c0_85] : memref<24x128xf32, #tpu.memory_space<vmem>>, vector<16x128xf32>
    %71 = arith.truncf %70 : vector<16x128xf32> to vector<16x128xbf16>
    %c0_86 = arith.constant 0 : index
    %c0_87 = arith.constant 0 : index
    %c0_88 = arith.constant 0 : index
    %72 = vector.load %arg4[%c0_86, %c0_87, %c0_88] : memref<1x16x128xbf16, #tpu.memory_space<vmem>>, vector<1x16x128xbf16>
    %73 = vector.shape_cast %72 : vector<1x16x128xbf16> to vector<16x128xbf16>
    %74 = vector.shape_cast %71 : vector<16x128xbf16> to vector<1x16x128xbf16>
    tpu.vector_store %arg4[%c0_86, %c0_87, %c0_88], %74 {strides = array<i32>} : memref<1x16x128xbf16, #tpu.memory_space<vmem>>, vector<1x16x128xbf16>,
    return
  }
  func.func @transform_0(%arg0: i32) -> (i32, i32, i32) {
    %c0_i32 = arith.constant 0 : i32
    %c0_i32_0 = arith.constant 0 : i32
    %c0_i32_1 = arith.constant 0 : i32
    return %arg0, %c0_i32, %c0_i32_0 : i32, i32, i32
  }
  func.func @transform_1(%arg0: i32) -> (i32, i32, i32, i32) {
    %c0_i32 = arith.constant 0 : i32
    %c0_i32_0 = arith.constant 0 : i32
    %c0_i32_1 = arith.constant 0 : i32
    %c0_i32_2 = arith.constant 0 : i32
    %c0_i32_3 = arith.constant 0 : i32
    return %c0_i32, %c0_i32_0, %c0_i32_1, %c0_i32_2 : i32, i32, i32, i32
  }
  func.func @transform_2(%arg0: i32) -> (i32, i32, i32) {
    %c0_i32 = arith.constant 0 : i32
    %c0_i32_0 = arith.constant 0 : i32
    %c0_i32_1 = arith.constant 0 : i32
    %c0_i32_2 = arith.constant 0 : i32
    return %c0_i32, %c0_i32_0, %c0_i32_1 : i32, i32, i32
  }
  func.func @transform_3(%arg0: i32) -> (i32, i32, i32) {
    %c0_i32 = arith.constant 0 : i32
    %c0_i32_0 = arith.constant 0 : i32
    %c0_i32_1 = arith.constant 0 : i32
    return %arg0, %c0_i32, %c0_i32_0 : i32, i32, i32
  }
}

</mosaic_0001>

<llo_original>
// kernel: generator_forward_slab.1
$region0: #{generator_forward_slab.1}
  #allocation0 [shape = 'u32[]', space=smem, size = 0x4, offset = 0x4, fixed_abs, tag = 'smem constant byte address 0x4 - core index']
  #allocation1 [shape = 'u32[72,128]{1,0:T(1,128)}', space=vmem, size = 0x9000, scoped, tag = 'internal scratch']
  #allocation2 [shape = 'f32[24,128]{1,0:T(8,128)}', space=vmem, size = 0x3000, scoped, tag = 'scratch operand']
  #allocation3 [shape = 'f32[16,128]{1,0:T(8,128)}', space=vmem, size = 0x2000, scoped, tag = 'scratch operand']
  %s0 = inlined_call_operand.hbm [shape: bf16[2,16,128], index: 0, kind: input, shape index: {}]
  %s1 = inlined_call_operand.hbm [shape: bf16[2,3,128,128], index: 1, kind: input, shape index: {}]
  %s2 = inlined_call_operand.hbm [shape: f32[2,1,128], index: 2, kind: input, shape index: {}]
  %s3 = inlined_call_operand.hbm [shape: bf16[2,16,128], index: 3, kind: output, shape index: {}]
  %s4 = sld [smem:[#allocation0]]
  $region57: #{generator_forward_slab.1} parent=0
    _
  %s6 = ssub.s32 1, %s4
  %s7 = scalar_select 0, %s6, %s4
  $region1: #{generator_forward_slab.1} parent=0
    #allocation4 [shape = 'u8[8192]{0}', space=vmem, size = 0x2000, scoped, tag = 'input window, operand 0']
    #allocation5 [shape = 's32[2]{0}', space=sflag, size = 0x8, scoped, tag = 'scoped memory for generator_forward_slab.1']
    #allocation6 [shape = 's32[2]{0}', space=sflag, size = 0x8, scoped, tag = 'scoped memory for generator_forward_slab.1']
    #allocation7 [shape = 'u8[196608]{0}', space=vmem, size = 0x30000, scoped, tag = 'input window, operand 1, single buffered']
    #allocation8 [shape = 's32[1]{0}', space=sflag, size = 0x4, scoped, tag = 'scoped memory for generator_forward_slab.1']
    #allocation9 [shape = 'u8[1024]{0}', space=vmem, size = 0x400, scoped, tag = 'input window, operand 2, single buffered']
    #allocation10 [shape = 'u8[8192]{0}', space=vmem, size = 0x2000, scoped, tag = 'output window, operand 0']
    %8 = vsyncpa [#allocation5], 0
    %s9 = scalar_lea.sflag [#allocation5], 1
    %10 = vsyncpa %s9, 0
    %11 = vsyncpa [#allocation8], 0
    %12 = vsyncpa [#allocation6], 0
    %s13 = scalar_lea.sflag [#allocation6], 1
    %14 = vsyncpa %s13, 0
    loop: start=0, step=1, limit=4
    $region2: #{generator_forward_slab.1} parent=1 // loop_pre_header
      _
    $region3: #{generator_forward_slab.1} parent=1 // loop_header
      %s16 = sphi 0, %s20
      %p17 = scmp.ge.s32.totalorder %s16, 4
      %s26 = sphi 0, %s28
      %s29 = sphi 0, %s26
      %s30 = sphi 0, %s29
      %s46 = sphi 0, %s30
      %s50 = sphi 0, %s50
      %s52 = sphi 0, %s50
      %s53 = sphi 0, %s52
      %s67 = sphi 0, %s53
      %s71 = sphi 0, %s71
      %s73 = sphi 0, %s71
      %s74 = sphi 0, %s73
      %s88 = sphi 0, %s74
      %s94 = sphi 0, %s96
      %s97 = sphi 0, %s94
      %s98 = sphi 0, %s97
      %s114 = sphi 0, %s98
    $region4: #{generator_forward_slab.1} parent=1 // loop_header_branch
      %19 = sbr.rel (%p17) target = $region8
    $region5: #{generator_forward_slab.1} parent=1 // loop_body
      %s21 = ssub.s32 %s16, 1
      %s22 = ssub.s32 %s16, 2
      %s23 = sadd.s32 %s16, 1
      %s24 = ssub.s32 %s16, %s23
      %p25 = scmp.eq.s32.totalorder %s24, 0
      %s27 = sadd.s32 %s26, 1
      %s28 = scalar_select %p25, %s26, %s27
      %p31 = pneg %p25
      %p32 = scmp.eq.s32.totalorder %s16, 1
      %p33 = por %p31, %p32
      %p34 = scmp.ne.s32.totalorder %s26, %s29
      %p35 = scmp.eq.s32.totalorder %s16, 0
      %p36 = por %p34, %p35
      %p37 = scmp.ne.s32.totalorder %s26, %s29
      %p38 = scmp.eq.s32.totalorder %s21, 1
      %p39 = por %p37, %p38
      %p40 = scmp.ne.s32.totalorder %s29, %s30
      %p41 = scmp.eq.s32.totalorder %s21, 0
      %p42 = por %p40, %p41
      %p43 = scmp.ne.s32.totalorder %s29, %s30
      %p44 = scmp.eq.s32.totalorder %s22, 1
      %p45 = por %p43, %p44
      %p47 = scmp.ne.s32.totalorder %s30, %s46
      %p48 = scmp.eq.s32.totalorder %s22, 0
      %p49 = por %p47, %p48
      %s51 = sadd.s32 %s50, 1
      %p54 = scmp.eq.s32.totalorder %s16, 1
      %p55 = scmp.ne.s32.totalorder %s50, %s52
      %p56 = scmp.eq.s32.totalorder %s16, 0
      %p57 = por %p55, %p56
      %p58 = scmp.ne.s32.totalorder %s50, %s52
      %p59 = scmp.eq.s32.totalorder %s21, 1
      %p60 = por %p58, %p59
      %p61 = scmp.ne.s32.totalorder %s52, %s53
      %p62 = scmp.eq.s32.totalorder %s21, 0
      %p63 = por %p61, %p62
      %p64 = scmp.ne.s32.totalorder %s52, %s53
      %p65 = scmp.eq.s32.totalorder %s22, 1
      %p66 = por %p64, %p65
      %p68 = scmp.ne.s32.totalorder %s53, %s67
      %p69 = scmp.eq.s32.totalorder %s22, 0
      %p70 = por %p68, %p69
      %s72 = sadd.s32 %s71, 1
      %p75 = scmp.eq.s32.totalorder %s16, 1
      %p76 = scmp.ne.s32.totalorder %s71, %s73
      %p77 = scmp.eq.s32.totalorder %s16, 0
      %p78 = por %p76, %p77
      %p79 = scmp.ne.s32.totalorder %s71, %s73
      %p80 = scmp.eq.s32.totalorder %s21, 1
      %p81 = por %p79, %p80
      %p82 = scmp.ne.s32.totalorder %s73, %s74
      %p83 = scmp.eq.s32.totalorder %s21, 0
      %p84 = por %p82, %p83
      %p85 = scmp.ne.s32.totalorder %s73, %s74
      %p86 = scmp.eq.s32.totalorder %s22, 1
      %p87 = por %p85, %p86
      %p89 = scmp.ne.s32.totalorder %s74, %s88
      %p90 = scmp.eq.s32.totalorder %s22, 0
      %p91 = por %p89, %p90
      %s92 = ssub.s32 %s16, %s23
      %p93 = scmp.eq.s32.totalorder %s92, 0
      %s95 = sadd.s32 %s94, 1
      %s96 = scalar_select %p93, %s94, %s95
      %p99 = pneg %p93
      %p100 = scmp.eq.s32.totalorder %s16, 1
      %p101 = por %p99, %p100
      %p102 = scmp.ne.s32.totalorder %s94, %s97
      %p103 = scmp.eq.s32.totalorder %s16, 0
      %p104 = por %p102, %p103
      %p105 = scmp.ne.s32.totalorder %s94, %s97
      %p106 = scmp.eq.s32.totalorder %s21, 1
      %p107 = por %p105, %p106
      %p108 = scmp.ne.s32.totalorder %s97, %s98
      %p109 = scmp.eq.s32.totalorder %s21, 0
      %p110 = por %p108, %p109
      %p111 = scmp.ne.s32.totalorder %s97, %s98
      %p112 = scmp.eq.s32.totalorder %s22, 1
      %p113 = por %p111, %p112
      %p115 = scmp.ne.s32.totalorder %s98, %s114
      %p116 = scmp.eq.s32.totalorder %s22, 0
      %p117 = por %p115, %p116
      %p118 = scmp.le.s32.totalorder 1, %s16
      %p119 = scmp.lt.s32.totalorder %s16, 3
      %p120 = pnand %p118, %p119
      %p121 = pneg %p120
      // Predicated region
      $region9: #{generator_forward_slab.1} parent=5 // pred_check
        _
      $region10: #{generator_forward_slab.1} parent=5 // pred_check_branch
        %123 = sbr.rel (%p120) target = $region12
      $region11: #{generator_forward_slab.1} parent=5 // pred_region
        %s124 = ssub.s32 %s16, 1
        // Predicated region
        $region13: #{generator_forward_slab.1} parent=11 // pred_check
          %p125 = pneg %p63
        $region14: #{generator_forward_slab.1} parent=11 // pred_check_branch
          %127 = sbr.rel (%p125) target = $region16
        $region15: #{generator_forward_slab.1} parent=11 // pred_region
          %129 = vsyncadd [#allocation8], 0
          %s130 = sshll.u32 %s1, 4
          %s131 = int_to_ptr.hbm [resolvable:$true] %s130
          %s132 = sshll.u32 [#allocation7], 4
          %s133 = int_to_ptr.vmem [resolvable:$true] %s132
          %138 = dma.hbm_to_vmem [thread:$0]  %s131, 6144, %s133, [#allocation8], 64, 64, 4
        $region16: #{generator_forward_slab.1} parent=11 // pred_fallthru
          _
        // Predicated region
        $region17: #{generator_forward_slab.1} parent=11 // pred_check
          %p139 = pneg %p84
        $region18: #{generator_forward_slab.1} parent=11 // pred_check_branch
          %141 = sbr.rel (%p139) target = $region20
        $region19: #{generator_forward_slab.1} parent=11 // pred_region
          %143 = vsyncadd [#allocation8], 0
          %s144 = sshll.u32 %s2, 4
          %s145 = int_to_ptr.hbm [resolvable:$true] %s144
          %s146 = sshll.u32 [#allocation9], 4
          %s147 = int_to_ptr.vmem [resolvable:$true] %s146
          %152 = dma.hbm_to_vmem [thread:$0]  %s145, 32, %s147, [#allocation8], 16, 16, 1
        $region20: #{generator_forward_slab.1} parent=11 // pred_fallthru
          _
      $region12: #{generator_forward_slab.1} parent=5 // pred_fallthru
        _
      %p153 = scmp.lt.s32.totalorder %s16, 2
      // Predicated region
      $region21: #{generator_forward_slab.1} parent=5 // pred_check
        %p154 = pneg %p153
      $region22: #{generator_forward_slab.1} parent=5 // pred_check_branch
        %156 = sbr.rel (%p154) target = $region24
      $region23: #{generator_forward_slab.1} parent=5 // pred_region
        // Predicated region
        $region25: #{generator_forward_slab.1} parent=23 // pred_check
          %p157 = pneg %p36
        $region26: #{generator_forward_slab.1} parent=23 // pred_check_branch
          %159 = sbr.rel (%p157) target = $region28
        $region27: #{generator_forward_slab.1} parent=23 // pred_region
          %s160 = sand.u32 %s26, 1
          %s161 = scalar_lea.sflag [#allocation5], %s160
          %s162 = sand.u32 %s26, 1
          %s163 = smul.addr %s162, 8
          %s164 = scalar_lea.vmem [#allocation4], %s163
          %166 = vsyncadd %s161, 0
          %s167 = smul.addr %s16, 2
          %s168 = smul.addr %s167, 4
          %s169 = scalar_lea.hbm %s0, %s168
          %s170 = sshll.u32 %s169, 4
          %s171 = int_to_ptr.hbm [resolvable:$true] %s170
          %s172 = sshll.u32 %s164, 4
          %s173 = int_to_ptr.vmem [resolvable:$true] %s172
          %178 = dma.hbm_to_vmem [thread:$0]  %s171, 128, %s173, %s161, 64, 64, 4
        $region28: #{generator_forward_slab.1} parent=23 // pred_fallthru
          _
      $region24: #{generator_forward_slab.1} parent=5 // pred_fallthru
        _
      %p179 = scmp.le.s32.totalorder 1, %s16
      %p180 = scmp.lt.s32.totalorder %s16, 3
      %p181 = pnand %p179, %p180
      %p182 = pneg %p181
      // Predicated region
      $region29: #{generator_forward_slab.1} parent=5 // pred_check
        _
      $region30: #{generator_forward_slab.1} parent=5 // pred_check_branch
        %184 = sbr.rel (%p181) target = $region32
      $region31: #{generator_forward_slab.1} parent=5 // pred_region
        %s185 = ssub.s32 %s16, 1
        %s186 = sand.u32 %s29, 1
        %s187 = scalar_lea.sflag [#allocation5], %s186
        %s188 = sand.u32 %s29, 1
        %s189 = smul.addr %s188, 8
        %s190 = scalar_lea.vmem [#allocation4], %s189
        // Predicated region
        $region33: #{generator_forward_slab.1} parent=31 // pred_check
          %p191 = pneg %p42
        $region34: #{generator_forward_slab.1} parent=31 // pred_check_branch
          %193 = sbr.rel (%p191) target = $region36
        $region35: #{generator_forward_slab.1} parent=31 // pred_region
          %195 = dma.done %s187, 128
        $region36: #{generator_forward_slab.1} parent=31 // pred_fallthru
          _
        // Predicated region
        $region37: #{generator_forward_slab.1} parent=31 // pred_check
          %p196 = pneg %p63
        $region38: #{generator_forward_slab.1} parent=31 // pred_check_branch
          %198 = sbr.rel (%p196) target = $region40
        $region39: #{generator_forward_slab.1} parent=31 // pred_region
          %200 = dma.done [#allocation8], 6144
        $region40: #{generator_forward_slab.1} parent=31 // pred_fallthru
          _
        // Predicated region
        $region41: #{generator_forward_slab.1} parent=31 // pred_check
          %p201 = pneg %p84
        $region42: #{generator_forward_slab.1} parent=31 // pred_check_branch
          %203 = sbr.rel (%p201) target = $region44
        $region43: #{generator_forward_slab.1} parent=31 // pred_region
          %205 = dma.done [#allocation8], 32
        $region44: #{generator_forward_slab.1} parent=31 // pred_fallthru
          _
        %s206 = sand.u32 %s29, 1
        %s207 = scalar_lea.sflag [#allocation5], %s206
        %s208 = sand.u32 %s29, 1
        %s209 = smul.addr %s208, 8
        %s210 = scalar_lea.vmem [#allocation4], %s209
        %p211 = pneg %p42
        %p212 = pneg %p39
        %p213 = pneg %p63
        %p214 = pneg %p60
        %p215 = pneg %p84
        %p216 = pneg %p81
        %p217 = pneg %p110
        %p218 = pneg %p107
        %s219 = sand.u32 %s97, 1
        %s220 = scalar_lea.sflag [#allocation6], %s219
        %s221 = sand.u32 %s97, 1
        %s222 = smul.addr %s221, 8
        %s223 = scalar_lea.vmem [#allocation10], %s222
        %224 = vst [vmem:[#allocation2] sm:$0xff] 0.0
        %225 = vst [vmem:[#allocation2 + $0x8] sm:$0xff] 0.0
        %226 = vst [vmem:[#allocation2 + $0x10] sm:$0xff] 0.0
        %v227 = vld [vmem:[%s190] sm:$0xf]
        %v228 = vld [vmem:[%s190 + $0x4] sm:$0xf]
        %v229 = vunpack.c.l.bf16 %v227
        %v230 = vunpack.c.l.bf16 %v228
        %231 = vst [vmem:[#allocation2 + $0x1] sm:$0xff] %v229
        %232 = vst [vmem:[#allocation2 + $0x9] sm:$0xff] %v230
        %v233 = vld [vmem:[#allocation2] sm:$0xff]
        %v234 = vld [vmem:[#allocation2 + $0x8] sm:$0xff]
        %v235 = vld [vmem:[#allocation2 + $0x10] sm:$0xff]
        %v236 = vpack.c.bf16 %v234, %v233
        %v237 = vpack.c.bf16 %v235, %v235
        %v238 = vld [vmem:[#allocation9] sm:$0x1]
        %v240 = vperm.slane %v238, 0
        %242 = vst [vmem:[#allocation3] sm:$0xff] %v240
        %243 = vst [vmem:[#allocation3 + $0x8] sm:$0xff] %v240
        %v244 = vld [vmem:[#allocation7] sm:$0xf]
        %v245 = vld [vmem:[#allocation7 + $0x4] sm:$0xf]
        %v246 = vld [vmem:[#allocation7 + $0x8] sm:$0xf]
        %v247 = vld [vmem:[#allocation7 + $0xc] sm:$0xf]
        %v248 = vld [vmem:[#allocation7 + $0x10] sm:$0xf]
        %v249 = vld [vmem:[#allocation7 + $0x14] sm:$0xf]
        %v250 = vld [vmem:[#allocation7 + $0x18] sm:$0xf]
        %v251 = vld [vmem:[#allocation7 + $0x1c] sm:$0xf]
        %v252 = vld [vmem:[#allocation7 + $0x20] sm:$0xf]
        %v253 = vld [vmem:[#allocation7 + $0x24] sm:$0xf]
        %v254 = vld [vmem:[#allocation7 + $0x28] sm:$0xf]
        %v255 = vld [vmem:[#allocation7 + $0x2c] sm:$0xf]
        %v256 = vld [vmem:[#allocation7 + $0x30] sm:$0xf]
        %v257 = vld [vmem:[#allocation7 + $0x34] sm:$0xf]
        %v258 = vld [vmem:[#allocation7 + $0x38] sm:$0xf]
        %v259 = vld [vmem:[#allocation7 + $0x3c] sm:$0xf]
        %v276 = vunpack.c.l.b16 %v244
        %v277 = vunpack.c.l.b16 %v245
        %v278 = vunpack.c.l.b16 %v246
        %v279 = vunpack.c.l.b16 %v247
        %v280 = vunpack.c.l.b16 %v248
        %v281 = vunpack.c.l.b16 %v249
        %v282 = vunpack.c.l.b16 %v250
        %v283 = vunpack.c.l.b16 %v251
        %v284 = vunpack.c.l.b16 %v252
        %v285 = vunpack.c.l.b16 %v253
        %v286 = vunpack.c.l.b16 %v254
        %v287 = vunpack.c.l.b16 %v255
        %v288 = vunpack.c.l.b16 %v256
        %v289 = vunpack.c.l.b16 %v257
        %v290 = vunpack.c.l.b16 %v258
        %v291 = vunpack.c.l.b16 %v259
        %v292 = vpack.c.b16 %v277, %v276
        %v293 = vpack.c.b16 %v279, %v278
        %v294 = vpack.c.b16 %v281, %v280
        %v295 = vpack.c.b16 %v283, %v282
        %v296 = vpack.c.b16 %v285, %v284
        %v297 = vpack.c.b16 %v287, %v286
        %v298 = vpack.c.b16 %v289, %v288
        %v299 = vpack.c.b16 %v291, %v290
        %308 = vmatpush.bf16.msra.mxu0 %v299
        %309 = vmatpush.bf16.msra.mxu0 %v298
        %310 = vmatpush.bf16.msra.mxu0 %v297
        %311 = vmatpush.bf16.msra.mxu0 %v296
        %312 = vmatpush.bf16.msra.mxu0 %v295
        %313 = vmatpush.bf16.msra.mxu0 %v294
        %314 = vmatpush.bf16.msra.mxu0 %v293
        %315 = vmatpush.bf16.msra.mxu0 %v292
        %316 = vmatmul.bf16.gmra.mxu0 %v236
        %v317 = vpop.f32.mrf.mxu0
        %v318 = vadd.f32 0.0, %v317
        %v319 = vpop.f32.mrf.mxu0
        %v320 = vadd.f32 0.0, %v319
        %321 = vmatmul.bf16.gmra.mxu0 %v237
        %v322 = vpop.f32.mrf.mxu0
        %v323 = vpop.f32.mrf.mxu0
        %324 = vdwg.mxu0
        %v325 = vld [vmem:[#allocation3] sm:$0xff]
        %v326 = vld [vmem:[#allocation3 + $0x8] sm:$0xff]
        %v327 = vadd.f32 %v325, %v318
        %v328 = vadd.f32 %v326, %v320
        %329 = vst [vmem:[#allocation3] sm:$0xff] %v327
        %330 = vst [vmem:[#allocation3 + $0x8] sm:$0xff] %v328
        %s331 = scalar_lea.vmem [#allocation7], 64
        %v332 = vld [vmem:[%s331] sm:$0xf]
        %v333 = vld [vmem:[%s331 + $0x4] sm:$0xf]
        %v334 = vld [vmem:[%s331 + $0x8] sm:$0xf]
        %v335 = vld [vmem:[%s331 + $0xc] sm:$0xf]
        %v336 = vld [vmem:[%s331 + $0x10] sm:$0xf]
        %v337 = vld [vmem:[%s331 + $0x14] sm:$0xf]
        %v338 = vld [vmem:[%s331 + $0x18] sm:$0xf]
        %v339 = vld [vmem:[%s331 + $0x1c] sm:$0xf]
        %v340 = vld [vmem:[%s331 + $0x20] sm:$0xf]
        %v341 = vld [vmem:[%s331 + $0x24] sm:$0xf]
        %v342 = vld [vmem:[%s331 + $0x28] sm:$0xf]
        %v343 = vld [vmem:[%s331 + $0x2c] sm:$0xf]
        %v344 = vld [vmem:[%s331 + $0x30] sm:$0xf]
        %v345 = vld [vmem:[%s331 + $0x34] sm:$0xf]
        %v346 = vld [vmem:[%s331 + $0x38] sm:$0xf]
        %v347 = vld [vmem:[%s331 + $0x3c] sm:$0xf]
        %v364 = vunpack.c.l.b16 %v332
        %v365 = vunpack.c.l.b16 %v333
        %v366 = vunpack.c.l.b16 %v334
        %v367 = vunpack.c.l.b16 %v335
        %v368 = vunpack.c.l.b16 %v336
        %v369 = vunpack.c.l.b16 %v337
        %v370 = vunpack.c.l.b16 %v338
        %v371 = vunpack.c.l.b16 %v339
        %v372 = vunpack.c.l.b16 %v340
        %v373 = vunpack.c.l.b16 %v341
        %v374 = vunpack.c.l.b16 %v342
        %v375 = vunpack.c.l.b16 %v343
        %v376 = vunpack.c.l.b16 %v344
        %v377 = vunpack.c.l.b16 %v345
        %v378 = vunpack.c.l.b16 %v346
        %v379 = vunpack.c.l.b16 %v347
        %v380 = vpack.c.b16 %v365, %v364
        %v381 = vpack.c.b16 %v367, %v366
        %v382 = vpack.c.b16 %v369, %v368
        %v383 = vpack.c.b16 %v371, %v370
        %v384 = vpack.c.b16 %v373, %v372
        %v385 = vpack.c.b16 %v375, %v374
        %v386 = vpack.c.b16 %v377, %v376
        %v387 = vpack.c.b16 %v379, %v378
        %396 = vmatpush.bf16.msra.mxu0 %v387
        %397 = vmatpush.bf16.msra.mxu0 %v386
        %398 = vmatpush.bf16.msra.mxu0 %v385
        %399 = vmatpush.bf16.msra.mxu0 %v384
        %400 = vmatpush.bf16.msra.mxu0 %v383
        %401 = vmatpush.bf16.msra.mxu0 %v382
        %402 = vmatpush.bf16.msra.mxu0 %v381
        %403 = vmatpush.bf16.msra.mxu0 %v380
        %404 = vmatmul.bf16.gmra.mxu0 %v236
        %v405 = vpop.f32.mrf.mxu0
        %v406 = vadd.f32 0.0, %v405
        %v407 = vpop.f32.mrf.mxu0
        %v408 = vadd.f32 0.0, %v407
        %409 = vmatmul.bf16.gmra.mxu0 %v237
        %v410 = vpop.f32.mrf.mxu0
        %v411 = vadd.f32 0.0, %v410
        %v412 = vpop.f32.mrf.mxu0
        %413 = vdwg.mxu0
        %v414 = vld [vmem:[#allocation3] sm:$0xff]
        %v415 = vld [vmem:[#allocation3 + $0x8] sm:$0xff]
        %vm419 = vcmask 1046528
        %v420 = vrot.slane %v406, 1
        %v421 = vrot.slane %v408, 1
        %v422 = vsel %vm419, %v420, %v421
        %v423 = vrot.slane %v411, 1
        %v424 = vsel %vm419, %v421, %v423
        %v427 = vadd.f32 %v414, %v422
        %v428 = vadd.f32 %v415, %v424
        %429 = vst [vmem:[#allocation3] sm:$0xff] %v427
        %430 = vst [vmem:[#allocation3 + $0x8] sm:$0xff] %v428
        %s431 = scalar_lea.vmem [#allocation7], 128
        %v432 = vld [vmem:[%s431] sm:$0xf]
        %v433 = vld [vmem:[%s431 + $0x4] sm:$0xf]
        %v434 = vld [vmem:[%s431 + $0x8] sm:$0xf]
        %v435 = vld [vmem:[%s431 + $0xc] sm:$0xf]
        %v436 = vld [vmem:[%s431 + $0x10] sm:$0xf]
        %v437 = vld [vmem:[%s431 + $0x14] sm:$0xf]
        %v438 = vld [vmem:[%s431 + $0x18] sm:$0xf]
        %v439 = vld [vmem:[%s431 + $0x1c] sm:$0xf]
        %v440 = vld [vmem:[%s431 + $0x20] sm:$0xf]
        %v441 = vld [vmem:[%s431 + $0x24] sm:$0xf]
        %v442 = vld [vmem:[%s431 + $0x28] sm:$0xf]
        %v443 = vld [vmem:[%s431 + $0x2c] sm:$0xf]
        %v444 = vld [vmem:[%s431 + $0x30] sm:$0xf]
        %v445 = vld [vmem:[%s431 + $0x34] sm:$0xf]
        %v446 = vld [vmem:[%s431 + $0x38] sm:$0xf]
        %v447 = vld [vmem:[%s431 + $0x3c] sm:$0xf]
        %v464 = vunpack.c.l.b16 %v432
        %v465 = vunpack.c.l.b16 %v433
        %v466 = vunpack.c.l.b16 %v434
        %v467 = vunpack.c.l.b16 %v435
        %v468 = vunpack.c.l.b16 %v436
        %v469 = vunpack.c.l.b16 %v437
        %v470 = vunpack.c.l.b16 %v438
        %v471 = vunpack.c.l.b16 %v439
        %v472 = vunpack.c.l.b16 %v440
        %v473 = vunpack.c.l.b16 %v441
        %v474 = vunpack.c.l.b16 %v442
        %v475 = vunpack.c.l.b16 %v443
        %v476 = vunpack.c.l.b16 %v444
        %v477 = vunpack.c.l.b16 %v445
        %v478 = vunpack.c.l.b16 %v446
        %v479 = vunpack.c.l.b16 %v447
        %v480 = vpack.c.b16 %v465, %v464
        %v481 = vpack.c.b16 %v467, %v466
        %v482 = vpack.c.b16 %v469, %v468
        %v483 = vpack.c.b16 %v471, %v470
        %v484 = vpack.c.b16 %v473, %v472
        %v485 = vpack.c.b16 %v475, %v474
        %v486 = vpack.c.b16 %v477, %v476
        %v487 = vpack.c.b16 %v479, %v478
        %496 = vmatpush.bf16.msra.mxu0 %v487
        %497 = vmatpush.bf16.msra.mxu0 %v486
        %498 = vmatpush.bf16.msra.mxu0 %v485
        %499 = vmatpush.bf16.msra.mxu0 %v484
        %500 = vmatpush.bf16.msra.mxu0 %v483
        %501 = vmatpush.bf16.msra.mxu0 %v482
        %502 = vmatpush.bf16.msra.mxu0 %v481
        %503 = vmatpush.bf16.msra.mxu0 %v480
        %504 = vmatmul.bf16.gmra.mxu0 %v236
        %v505 = vpop.f32.mrf.mxu0
        %v506 = vadd.f32 0.0, %v505
        %v507 = vpop.f32.mrf.mxu0
        %v508 = vadd.f32 0.0, %v507
        %509 = vmatmul.bf16.gmra.mxu0 %v237
        %v510 = vpop.f32.mrf.mxu0
        %v511 = vadd.f32 0.0, %v510
        %v512 = vpop.f32.mrf.mxu0
        %513 = vdwg.mxu0
        %v514 = vld [vmem:[#allocation3] sm:$0xff]
        %v515 = vld [vmem:[#allocation3 + $0x8] sm:$0xff]
        %vm519 = vcmask 1045504
        %v520 = vrot.slane %v506, 2
        %v521 = vrot.slane %v508, 2
        %v522 = vsel %vm519, %v520, %v521
        %v523 = vrot.slane %v511, 2
        %v524 = vsel %vm519, %v521, %v523
        %v527 = vadd.f32 %v514, %v522
        %v528 = vadd.f32 %v515, %v524
        %529 = vst [vmem:[#allocation3] sm:$0xff] %v527
        %530 = vst [vmem:[#allocation3 + $0x8] sm:$0xff] %v528
        %v531 = vld [vmem:[#allocation2 + $0x1] sm:$0xff]
        %v532 = vld [vmem:[#allocation2 + $0x9] sm:$0xff]
        %v533 = vld [vmem:[#allocation3] sm:$0xff]
        %v534 = vld [vmem:[#allocation3 + $0x8] sm:$0xff]
        %v535 = vadd.f32 %v531, %v533
        %v536 = vadd.f32 %v532, %v534
        %537 = vst [vmem:[#allocation2 + $0x1] sm:$0xff] %v535
        %538 = vst [vmem:[#allocation2 + $0x9] sm:$0xff] %v536
        %v539 = vld [vmem:[#allocation2] sm:$0xff]
        %v540 = vld [vmem:[#allocation2 + $0x8] sm:$0xff]
        %v541 = vld [vmem:[#allocation2 + $0x10] sm:$0xff]
        %v542 = vpack.c.bf16 %v540, %v539
        %v543 = vpack.c.bf16 %v541, %v541
        %s544 = scalar_lea.vmem [#allocation9], 1
        %v545 = vld [vmem:[%s544] sm:$0x1]
        %v547 = vperm.slane %v545, 0
        %549 = vst [vmem:[#allocation3] sm:$0xff] %v547
        %550 = vst [vmem:[#allocation3 + $0x8] sm:$0xff] %v547
        %s551 = scalar_lea.vmem [#allocation7], 192
        %v552 = vld [vmem:[%s551] sm:$0xf]
        %v553 = vld [vmem:[%s551 + $0x4] sm:$0xf]
        %v554 = vld [vmem:[%s551 + $0x8] sm:$0xf]
        %v555 = vld [vmem:[%s551 + $0xc] sm:$0xf]
        %v556 = vld [vmem:[%s551 + $0x10] sm:$0xf]
        %v557 = vld [vmem:[%s551 + $0x14] sm:$0xf]
        %v558 = vld [vmem:[%s551 + $0x18] sm:$0xf]
        %v559 = vld [vmem:[%s551 + $0x1c] sm:$0xf]
        %v560 = vld [vmem:[%s551 + $0x20] sm:$0xf]
        %v561 = vld [vmem:[%s551 + $0x24] sm:$0xf]
        %v562 = vld [vmem:[%s551 + $0x28] sm:$0xf]
        %v563 = vld [vmem:[%s551 + $0x2c] sm:$0xf]
        %v564 = vld [vmem:[%s551 + $0x30] sm:$0xf]
        %v565 = vld [vmem:[%s551 + $0x34] sm:$0xf]
        %v566 = vld [vmem:[%s551 + $0x38] sm:$0xf]
        %v567 = vld [vmem:[%s551 + $0x3c] sm:$0xf]
        %v584 = vunpack.c.l.b16 %v552
        %v585 = vunpack.c.l.b16 %v553
        %v586 = vunpack.c.l.b16 %v554
        %v587 = vunpack.c.l.b16 %v555
        %v588 = vunpack.c.l.b16 %v556
        %v589 = vunpack.c.l.b16 %v557
        %v590 = vunpack.c.l.b16 %v558
        %v591 = vunpack.c.l.b16 %v559
        %v592 = vunpack.c.l.b16 %v560
        %v593 = vunpack.c.l.b16 %v561
        %v594 = vunpack.c.l.b16 %v562
        %v595 = vunpack.c.l.b16 %v563
        %v596 = vunpack.c.l.b16 %v564
        %v597 = vunpack.c.l.b16 %v565
        %v598 = vunpack.c.l.b16 %v566
        %v599 = vunpack.c.l.b16 %v567
        %v600 = vpack.c.b16 %v585, %v584
        %v601 = vpack.c.b16 %v587, %v586
        %v602 = vpack.c.b16 %v589, %v588
        %v603 = vpack.c.b16 %v591, %v590
        %v604 = vpack.c.b16 %v593, %v592
        %v605 = vpack.c.b16 %v595, %v594
        %v606 = vpack.c.b16 %v597, %v596
        %v607 = vpack.c.b16 %v599, %v598
        %616 = vmatpush.bf16.msra.mxu0 %v607
        %617 = vmatpush.bf16.msra.mxu0 %v606
        %618 = vmatpush.bf16.msra.mxu0 %v605
        %619 = vmatpush.bf16.msra.mxu0 %v604
        %620 = vmatpush.bf16.msra.mxu0 %v603
        %621 = vmatpush.bf16.msra.mxu0 %v602
        %622 = vmatpush.bf16.msra.mxu0 %v601
        %623 = vmatpush.bf16.msra.mxu0 %v600
        %624 = vmatmul.bf16.gmra.mxu0 %v542
        %v625 = vpop.f32.mrf.mxu0
        %v626 = vadd.f32 0.0, %v625
        %v627 = vpop.f32.mrf.mxu0
        %v628 = vadd.f32 0.0, %v627
        %629 = vmatmul.bf16.gmra.mxu0 %v543
        %v630 = vpop.f32.mrf.mxu0
        %v631 = vpop.f32.mrf.mxu0
        %632 = vdwg.mxu0
        %v633 = vld [vmem:[#allocation3] sm:$0xff]
        %v634 = vld [vmem:[#allocation3 + $0x8] sm:$0xff]
        %v635 = vadd.f32 %v633, %v626
        %v636 = vadd.f32 %v634, %v628
        %637 = vst [vmem:[#allocation3] sm:$0xff] %v635
        %638 = vst [vmem:[#allocation3 + $0x8] sm:$0xff] %v636
        %s639 = scalar_lea.vmem [#allocation7], 256
        %v640 = vld [vmem:[%s639] sm:$0xf]
        %v641 = vld [vmem:[%s639 + $0x4] sm:$0xf]
        %v642 = vld [vmem:[%s639 + $0x8] sm:$0xf]
        %v643 = vld [vmem:[%s639 + $0xc] sm:$0xf]
        %v644 = vld [vmem:[%s639 + $0x10] sm:$0xf]
        %v645 = vld [vmem:[%s639 + $0x14] sm:$0xf]
        %v646 = vld [vmem:[%s639 + $0x18] sm:$0xf]
        %v647 = vld [vmem:[%s639 + $0x1c] sm:$0xf]
        %v648 = vld [vmem:[%s639 + $0x20] sm:$0xf]
        %v649 = vld [vmem:[%s639 + $0x24] sm:$0xf]
        %v650 = vld [vmem:[%s639 + $0x28] sm:$0xf]
        %v651 = vld [vmem:[%s639 + $0x2c] sm:$0xf]
        %v652 = vld [vmem:[%s639 + $0x30] sm:$0xf]
        %v653 = vld [vmem:[%s639 + $0x34] sm:$0xf]
        %v654 = vld [vmem:[%s639 + $0x38] sm:$0xf]
        %v655 = vld [vmem:[%s639 + $0x3c] sm:$0xf]
        %v672 = vunpack.c.l.b16 %v640
        %v673 = vunpack.c.l.b16 %v641
        %v674 = vunpack.c.l.b16 %v642
        %v675 = vunpack.c.l.b16 %v643
        %v676 = vunpack.c.l.b16 %v644
        %v677 = vunpack.c.l.b16 %v645
        %v678 = vunpack.c.l.b16 %v646
        %v679 = vunpack.c.l.b16 %v647
        %v680 = vunpack.c.l.b16 %v648
        %v681 = vunpack.c.l.b16 %v649
        %v682 = vunpack.c.l.b16 %v650
        %v683 = vunpack.c.l.b16 %v651
        %v684 = vunpack.c.l.b16 %v652
        %v685 = vunpack.c.l.b16 %v653
        %v686 = vunpack.c.l.b16 %v654
        %v687 = vunpack.c.l.b16 %v655
        %v688 = vpack.c.b16 %v673, %v672
        %v689 = vpack.c.b16 %v675, %v674
        %v690 = vpack.c.b16 %v677, %v676
        %v691 = vpack.c.b16 %v679, %v678
        %v692 = vpack.c.b16 %v681, %v680
        %v693 = vpack.c.b16 %v683, %v682
        %v694 = vpack.c.b16 %v685, %v684
        %v695 = vpack.c.b16 %v687, %v686
        %704 = vmatpush.bf16.msra.mxu0 %v695
        %705 = vmatpush.bf16.msra.mxu0 %v694
        %706 = vmatpush.bf16.msra.mxu0 %v693
        %707 = vmatpush.bf16.msra.mxu0 %v692
        %708 = vmatpush.bf16.msra.mxu0 %v691
        %709 = vmatpush.bf16.msra.mxu0 %v690
        %710 = vmatpush.bf16.msra.mxu0 %v689
        %711 = vmatpush.bf16.msra.mxu0 %v688
        %712 = vmatmul.bf16.gmra.mxu0 %v542
        %v713 = vpop.f32.mrf.mxu0
        %v714 = vadd.f32 0.0, %v713
        %v715 = vpop.f32.mrf.mxu0
        %v716 = vadd.f32 0.0, %v715
        %717 = vmatmul.bf16.gmra.mxu0 %v543
        %v718 = vpop.f32.mrf.mxu0
        %v719 = vadd.f32 0.0, %v718
        %v720 = vpop.f32.mrf.mxu0
        %721 = vdwg.mxu0
        %v722 = vld [vmem:[#allocation3] sm:$0xff]
        %v723 = vld [vmem:[#allocation3 + $0x8] sm:$0xff]
        %v727 = vrot.slane %v714, 1
        %v728 = vrot.slane %v716, 1
        %v729 = vsel %vm419, %v727, %v728
        %v730 = vrot.slane %v719, 1
        %v731 = vsel %vm419, %v728, %v730
        %v734 = vadd.f32 %v722, %v729
        %v735 = vadd.f32 %v723, %v731
        %736 = vst [vmem:[#allocation3] sm:$0xff] %v734
        %737 = vst [vmem:[#allocation3 + $0x8] sm:$0xff] %v735
        %s738 = scalar_lea.vmem [#allocation7], 320
        %v739 = vld [vmem:[%s738] sm:$0xf]
        %v740 = vld [vmem:[%s738 + $0x4] sm:$0xf]
        %v741 = vld [vmem:[%s738 + $0x8] sm:$0xf]
        %v742 = vld [vmem:[%s738 + $0xc] sm:$0xf]
        %v743 = vld [vmem:[%s738 + $0x10] sm:$0xf]
        %v744 = vld [vmem:[%s738 + $0x14] sm:$0xf]
        %v745 = vld [vmem:[%s738 + $0x18] sm:$0xf]
        %v746 = vld [vmem:[%s738 + $0x1c] sm:$0xf]
        %v747 = vld [vmem:[%s738 + $0x20] sm:$0xf]
        %v748 = vld [vmem:[%s738 + $0x24] sm:$0xf]
        %v749 = vld [vmem:[%s738 + $0x28] sm:$0xf]
        %v750 = vld [vmem:[%s738 + $0x2c] sm:$0xf]
        %v751 = vld [vmem:[%s738 + $0x30] sm:$0xf]
        %v752 = vld [vmem:[%s738 + $0x34] sm:$0xf]
        %v753 = vld [vmem:[%s738 + $0x38] sm:$0xf]
        %v754 = vld [vmem:[%s738 + $0x3c] sm:$0xf]
        %v771 = vunpack.c.l.b16 %v739
        %v772 = vunpack.c.l.b16 %v740
        %v773 = vunpack.c.l.b16 %v741
        %v774 = vunpack.c.l.b16 %v742
        %v775 = vunpack.c.l.b16 %v743
        %v776 = vunpack.c.l.b16 %v744
        %v777 = vunpack.c.l.b16 %v745
        %v778 = vunpack.c.l.b16 %v746
        %v779 = vunpack.c.l.b16 %v747
        %v780 = vunpack.c.l.b16 %v748
        %v781 = vunpack.c.l.b16 %v749
        %v782 = vunpack.c.l.b16 %v750
        %v783 = vunpack.c.l.b16 %v751
        %v784 = vunpack.c.l.b16 %v752
        %v785 = vunpack.c.l.b16 %v753
        %v786 = vunpack.c.l.b16 %v754
        %v787 = vpack.c.b16 %v772, %v771
        %v788 = vpack.c.b16 %v774, %v773
        %v789 = vpack.c.b16 %v776, %v775
        %v790 = vpack.c.b16 %v778, %v777
        %v791 = vpack.c.b16 %v780, %v779
        %v792 = vpack.c.b16 %v782, %v781
        %v793 = vpack.c.b16 %v784, %v783
        %v794 = vpack.c.b16 %v786, %v785
        %803 = vmatpush.bf16.msra.mxu0 %v794
        %804 = vmatpush.bf16.msra.mxu0 %v793
        %805 = vmatpush.bf16.msra.mxu0 %v792
        %806 = vmatpush.bf16.msra.mxu0 %v791
        %807 = vmatpush.bf16.msra.mxu0 %v790
        %808 = vmatpush.bf16.msra.mxu0 %v789
        %809 = vmatpush.bf16.msra.mxu0 %v788
        %810 = vmatpush.bf16.msra.mxu0 %v787
        %811 = vmatmul.bf16.gmra.mxu0 %v542
        %v812 = vpop.f32.mrf.mxu0
        %v813 = vadd.f32 0.0, %v812
        %v814 = vpop.f32.mrf.mxu0
        %v815 = vadd.f32 0.0, %v814
        %816 = vmatmul.bf16.gmra.mxu0 %v543
        %v817 = vpop.f32.mrf.mxu0
        %v818 = vadd.f32 0.0, %v817
        %v819 = vpop.f32.mrf.mxu0
        %820 = vdwg.mxu0
        %v821 = vld [vmem:[#allocation3] sm:$0xff]
        %v822 = vld [vmem:[#allocation3 + $0x8] sm:$0xff]
        %v826 = vrot.slane %v813, 2
        %v827 = vrot.slane %v815, 2
        %v828 = vsel %vm519, %v826, %v827
        %v829 = vrot.slane %v818, 2
        %v830 = vsel %vm519, %v827, %v829
        %v833 = vadd.f32 %v821, %v828
        %v834 = vadd.f32 %v822, %v830
        %835 = vst [vmem:[#allocation3] sm:$0xff] %v833
        %836 = vst [vmem:[#allocation3 + $0x8] sm:$0xff] %v834
        %v837 = vld [vmem:[#allocation2 + $0x1] sm:$0xff]
        %v838 = vld [vmem:[#allocation2 + $0x9] sm:$0xff]
        %v839 = vld [vmem:[#allocation3] sm:$0xff]
        %v840 = vld [vmem:[#allocation3 + $0x8] sm:$0xff]
        %v841 = vadd.f32 %v837, %v839
        %v842 = vadd.f32 %v838, %v840
        %843 = vst [vmem:[#allocation2 + $0x1] sm:$0xff] %v841
        %844 = vst [vmem:[#allocation2 + $0x9] sm:$0xff] %v842
        %v845 = vld [vmem:[#allocation2 + $0x1] sm:$0xff]
        %v846 = vld [vmem:[#allocation2 + $0x9] sm:$0xff]
        %v847 = vpack.c.bf16 %v845, %v845
        %v848 = vpack.c.bf16 %v846, %v846
        %849 = vst [vmem:[%s223] sm:$0xf] %v847
        %850 = vst [vmem:[%s223 + $0x4] sm:$0xf] %v848
        %s851 = sand.u32 %s97, 1
        %s852 = scalar_lea.sflag [#allocation6], %s851
        %s853 = sand.u32 %s97, 1
        %s854 = smul.addr %s853, 8
        %s855 = scalar_lea.vmem [#allocation10], %s854
        // Predicated region
        $region45: #{generator_forward_slab.1} parent=31 // pred_check
          %p856 = pneg %p107
        $region46: #{generator_forward_slab.1} parent=31 // pred_check_branch
          %858 = sbr.rel (%p856) target = $region48
        $region47: #{generator_forward_slab.1} parent=31 // pred_region
          %860 = vsyncadd %s852, 0
          %s861 = smul.addr %s21, 2
          %s862 = smul.addr %s861, 4
          %s863 = scalar_lea.hbm %s3, %s862
          %s864 = sshll.u32 %s855, 4
          %s865 = int_to_ptr.vmem [resolvable:$true] %s864
          %s866 = sshll.u32 %s863, 4
          %s867 = int_to_ptr.hbm [resolvable:$true] %s866
          %872 = dma.vmem_to_hbm [thread:$0]  %s865, 128, %s867, %s852, 64, 64, 4
        $region48: #{generator_forward_slab.1} parent=31 // pred_fallthru
          _
      $region32: #{generator_forward_slab.1} parent=5 // pred_fallthru
        _
      %p873 = scmp.le.s32.totalorder 2, %s16
      // Predicated region
      $region49: #{generator_forward_slab.1} parent=5 // pred_check
        %p874 = pneg %p873
      $region50: #{generator_forward_slab.1} parent=5 // pred_check_branch
        %876 = sbr.rel (%p874) target = $region52
      $region51: #{generator_forward_slab.1} parent=5 // pred_region
        %s877 = ssub.s32 %s16, 2
        // Predicated region
        $region53: #{generator_forward_slab.1} parent=51 // pred_check
          %p878 = pneg %p113
        $region54: #{generator_forward_slab.1} parent=51 // pred_check_branch
          %880 = sbr.rel (%p878) target = $region56
        $region55: #{generator_forward_slab.1} parent=51 // pred_region
          %s881 = sand.u32 %s98, 1
          %s882 = scalar_lea.sflag [#allocation6], %s881
          %s883 = sand.u32 %s98, 1
          %s884 = smul.addr %s883, 8
          %s885 = scalar_lea.vmem [#allocation10], %s884
          %887 = dma.done %s882, 128
        $region56: #{generator_forward_slab.1} parent=51 // pred_fallthru
          _
      $region52: #{generator_forward_slab.1} parent=5 // pred_fallthru
        _
    $region6: #{generator_forward_slab.1} parent=1 // loop_footer
      %s20 = sadd.s32 1, %s16
    $region7: #{generator_forward_slab.1} parent=1 // loop_footer_branch
      %15 = sbr.rel target = $region3
    $region8: #{generator_forward_slab.1} parent=1 // loop_exit
      _
    %888 = vsyncpa [#allocation5], 1
    %s889 = scalar_lea.sflag [#allocation5], 1
    %890 = vsyncpa %s889, 1
    %891 = vsyncpa [#allocation8], 1
    %892 = vsyncpa [#allocation6], 1
    %s893 = scalar_lea.sflag [#allocation6], 1
    %894 = vsyncpa %s893, 1

</llo_original>
